<compile_context>
chip_gen: v7x
topology: tpu7x:2x2x1
jax: 0.10.0
libtpu: 0.0.40
codegen_flags: <defaults>
</compile_context>

<pallas_src>
import functools

import jax
import jax.numpy as jnp
from jax.experimental import pallas as pl
from jax.experimental.pallas import tpu as pltpu

NUM_CLASSES = 4
EPSILON = 0.1
CLASS_WEIGHT = [0.1, 0.2, 0.3, 0.4]

_LANE = 128      # TPU lane width
_MAX_TB = 2048   # samples per grid step (VMEM footprint ~ (C+2)*TB*4 B -> tiny)


def _cels_kernel(x_ref, t_ref, out_ref, acc_ref, *, batch, tile_b):
    # x_ref  : (C, TB)  f32 logits tile  -- classes on sublanes, samples on lanes
    # t_ref  : (1, TB)  i32 target class ids
    # out_ref: (1, 1)   f32 scalar loss  (SMEM)
    # acc_ref: (1, TB)  f32 running per-lane loss accumulator (VMEM scratch)
    i = pl.program_id(0)

    @pl.when(i == 0)
    def _init():
        acc_ref[...] = jnp.zeros_like(acc_ref)

    keep = 1.0 - EPSILON
    smooth = EPSILON / NUM_CLASSES
    w = [float(v) for v in CLASS_WEIGHT]
    w_sum = float(sum(w))

    # Unrolled over the compile-time C=4 classes: every op below is a
    # lane-dense (1, TB) VPU op.
    rows = [x_ref[c:c + 1, :] for c in range(NUM_CLASSES)]
    m = rows[0]
    for r in rows[1:]:
        m = jnp.maximum(m, r)
    shifted = [r - m for r in rows]

    sum_exp = jnp.exp(shifted[0])
    for s in shifted[1:]:
        sum_exp = sum_exp + jnp.exp(s)
    lse = jnp.log(sum_exp)                                  # (1, TB)

    t = t_ref[...]                                          # (1, TB) int32
    shifted_t = shifted[0]
    w_t = jnp.full_like(lse, w[0])
    for c in range(1, NUM_CLASSES):
        is_c = t == c
        shifted_t = jnp.where(is_c, shifted[c], shifted_t)
        w_t = jnp.where(is_c, w[c], w_t)

    w_dot_shifted = w[0] * shifted[0]
    for c in range(1, NUM_CLASSES):
        w_dot_shifted = w_dot_shifted + w[c] * shifted[c]

    # Per-sample smoothed, weighted CE:
    #   (1-eps)*w[t]*(lse - z[t]) + (eps/C)*(sum(w)*lse - sum_c w[c]*z[c])
    loss_lane = keep * w_t * (lse - shifted_t) + smooth * (w_sum * lse - w_dot_shifted)

    # Mask lanes beyond the true batch (wrapper padding / ragged last tile).
    lane = jax.lax.broadcasted_iota(jnp.int32, (1, tile_b), 1)
    valid = (i * tile_b + lane) < batch
    acc_ref[...] = acc_ref[...] + jnp.where(valid, loss_lane, 0.0)

    @pl.when(i == pl.num_programs(0) - 1)
    def _finalize():
        out_ref[0, 0] = jnp.sum(acc_ref[...]) * (1.0 / batch)


def cross_entropy_label_smooth(inputs, targets):
    """inputs: (B, C) f32 logits; targets: (B,) int class ids. Returns scalar f32 loss."""
    B, C = inputs.shape
    assert C == NUM_CLASSES

    # Lane-dense layout: classes on sublanes, batch on lanes.
    x_t = jnp.transpose(inputs.astype(jnp.float32))          # (C, B)
    t = targets.astype(jnp.int32).reshape(1, B)               # (1, B)

    # Pad batch up to a lane multiple so every block is lane-aligned.
    b_pad = ((B + _LANE - 1) // _LANE) * _LANE
    if b_pad != B:
        x_t = jnp.pad(x_t, ((0, 0), (0, b_pad - B)))
        t = jnp.pad(t, ((0, 0), (0, b_pad - B)))

    tile_b = min(b_pad, _MAX_TB)
    grid = (pl.cdiv(b_pad, tile_b),)

    kernel = functools.partial(_cels_kernel, batch=B, tile_b=tile_b)

    out = pl.pallas_call(
        kernel,
        out_shape=jax.ShapeDtypeStruct((1, 1), jnp.float32),
        grid=grid,
        in_specs=[
            pl.BlockSpec((NUM_CLASSES, tile_b), lambda i: (0, i)),
            pl.BlockSpec((1, tile_b), lambda i: (0, i)),
        ],
        out_specs=pl.BlockSpec(memory_space=pltpu.MemorySpace.SMEM),
        scratch_shapes=[pltpu.VMEM((1, tile_b), jnp.float32)],
        compiler_params=pltpu.CompilerParams(
            # Scalar accumulator carries across the batch grid axis.
            # TODO(synk): on v7x, emit per-tile partial sums with a "parallel"
            # axis (reduced in the wrapper) to use both TensorCores.
            dimension_semantics=("arbitrary",),
        ),
    )(x_t, t)
    return out[0, 0]


def _reference(inputs, targets):
    # Plain-JAX reference mirroring the PyTorch forward exactly.
    log_probs = jax.nn.log_softmax(inputs, axis=1)
    onehot = jax.nn.one_hot(targets, NUM_CLASSES, dtype=jnp.float32)
    smoothed = (1.0 - EPSILON) * onehot + EPSILON / NUM_CLASSES
    w = jnp.asarray(CLASS_WEIGHT, dtype=jnp.float32)[None, :]
    return (-smoothed * log_probs * w).mean(0).sum()


if __name__ == "__main__":
    key = jax.random.PRNGKey(0)
    k1, k2 = jax.random.split(key)
    B = 8
    inputs = jax.random.normal(k1, (B, NUM_CLASSES), dtype=jnp.float32)
    targets = jax.random.randint(k2, (B,), 0, NUM_CLASSES, dtype=jnp.int32)

    loss = cross_entropy_label_smooth(inputs, targets)
    loss = jax.block_until_ready(loss)

    ref = _reference(inputs, targets)
    assert jnp.allclose(loss, ref, rtol=1e-5, atol=1e-5), (loss, ref)
    print("KERNEL_OK")
</pallas_src>

<mosaic_0001>
module attributes {stable_mosaic.version = 11 : i64} {
  func.func @_cels_kernel(%arg0: i32, %arg1: memref<4x128xf32, #tpu.memory_space<vmem>>, %arg2: memref<1x128xi32, #tpu.memory_space<vmem>>, %arg3: memref<1x1xf32, #tpu.memory_space<smem>>, %arg4: memref<1x128xf32, #tpu.memory_space<vmem>>) attributes {dimension_semantics = [#tpu.dimension_semantics<arbitrary>], iteration_bounds = array<i64: 1>, scalar_prefetch = 0 : i64, scratch_operands = 1 : i64, tpu.core_type = #tpu.core_type<tc>, window_params = [{transform_indices = @transform_0, window_bounds = array<i64: 4, 128>}, {transform_indices = @transform_1, window_bounds = array<i64: 1, 128>}, {transform_indices = @transform_2, window_bounds = array<i64: 1, 1>}]} {
    %c0_i32 = arith.constant 0 : i32
    %0 = arith.cmpi eq, %arg0, %c0_i32 : i32
    %1 = arith.extui %0 : i1 to i32
    %c0_i32_0 = arith.constant 0 : i32
    %2 = arith.cmpi ne, %1, %c0_i32_0 : i32
    scf.if %2 {
      %cst_24 = arith.constant 0.000000e+00 : f32
      %74 = vector.broadcast %cst_24 : f32 to vector<1x128xf32>
      %c0_25 = arith.constant 0 : index
      %c0_26 = arith.constant 0 : index
      %75 = vector.load %arg4[%c0_25, %c0_26] : memref<1x128xf32, #tpu.memory_space<vmem>>, vector<1x128xf32>
      tpu.vector_store %arg4[%c0_25, %c0_26], %74 {strides = array<i32>} : memref<1x128xf32, #tpu.memory_space<vmem>>, vector<1x128xf32>,
    } else {
    }
    %c0 = arith.constant 0 : index
    %c0_1 = arith.constant 0 : index
    %3 = vector.load %arg1[%c0, %c0_1] : memref<4x128xf32, #tpu.memory_space<vmem>>, vector<1x128xf32>
    %c1 = arith.constant 1 : index
    %c0_2 = arith.constant 0 : index
    %4 = vector.load %arg1[%c1, %c0_2] : memref<4x128xf32, #tpu.memory_space<vmem>>, vector<1x128xf32>
    %c2 = arith.constant 2 : index
    %c0_3 = arith.constant 0 : index
    %5 = vector.load %arg1[%c2, %c0_3] : memref<4x128xf32, #tpu.memory_space<vmem>>, vector<1x128xf32>
    %c3 = arith.constant 3 : index
    %c0_4 = arith.constant 0 : index
    %6 = vector.load %arg1[%c3, %c0_4] : memref<4x128xf32, #tpu.memory_space<vmem>>, vector<1x128xf32>
    %7 = arith.maximumf %3, %4 : vector<1x128xf32>
    %8 = arith.maximumf %7, %5 : vector<1x128xf32>
    %9 = arith.maximumf %8, %6 : vector<1x128xf32>
    %10 = arith.subf %3, %9 : vector<1x128xf32>
    %11 = arith.subf %4, %9 : vector<1x128xf32>
    %12 = arith.subf %5, %9 : vector<1x128xf32>
    %13 = arith.subf %6, %9 : vector<1x128xf32>
    %14 = math.exp %10 : vector<1x128xf32>
    %15 = math.exp %11 : vector<1x128xf32>
    %16 = arith.addf %14, %15 : vector<1x128xf32>
    %17 = math.exp %12 : vector<1x128xf32>
    %18 = arith.addf %16, %17 : vector<1x128xf32>
    %19 = math.exp %13 : vector<1x128xf32>
    %20 = arith.addf %18, %19 : vector<1x128xf32>
    %21 = math.log %20 : vector<1x128xf32>
    %c0_5 = arith.constant 0 : index
    %c0_6 = arith.constant 0 : index
    %22 = vector.load %arg2[%c0_5, %c0_6] : memref<1x128xi32, #tpu.memory_space<vmem>>, vector<1x128xi32>
    %cst = arith.constant 1.000000e-01 : f32
    %23 = vector.broadcast %cst : f32 to vector<1x128xf32>
    %c1_i32 = arith.constant 1 : i32
    %24 = vector.broadcast %c1_i32 : i32 to vector<1x128xi32>
    %25 = arith.cmpi eq, %22, %24 : vector<1x128xi32>
    %26 = arith.select %25, %11, %10 : vector<1x128xi1>, vector<1x128xf32>
    %cst_7 = arith.constant 2.000000e-01 : f32
    %27 = vector.broadcast %cst_7 : f32 to vector<1x128xf32>
    %28 = arith.select %25, %27, %23 : vector<1x128xi1>, vector<1x128xf32>
    %c2_i32 = arith.constant 2 : i32
    %29 = vector.broadcast %c2_i32 : i32 to vector<1x128xi32>
    %30 = arith.cmpi eq, %22, %29 : vector<1x128xi32>
    %31 = arith.select %30, %12, %26 : vector<1x128xi1>, vector<1x128xf32>
    %cst_8 = arith.constant 3.000000e-01 : f32
    %32 = vector.broadcast %cst_8 : f32 to vector<1x128xf32>
    %33 = arith.select %30, %32, %28 : vector<1x128xi1>, vector<1x128xf32>
    %c3_i32 = arith.constant 3 : i32
    %34 = vector.broadcast %c3_i32 : i32 to vector<1x128xi32>
    %35 = arith.cmpi eq, %22, %34 : vector<1x128xi32>
    %36 = arith.select %35, %13, %31 : vector<1x128xi1>, vector<1x128xf32>
    %cst_9 = arith.constant 4.000000e-01 : f32
    %37 = vector.broadcast %cst_9 : f32 to vector<1x128xf32>
    %38 = arith.select %35, %37, %33 : vector<1x128xi1>, vector<1x128xf32>
    %cst_10 = arith.constant 1.000000e-01 : f32
    %39 = vector.broadcast %cst_10 : f32 to vector<1x128xf32>
    %40 = arith.mulf %39, %10 : vector<1x128xf32>
    %cst_11 = arith.constant 2.000000e-01 : f32
    %41 = vector.broadcast %cst_11 : f32 to vector<1x128xf32>
    %42 = arith.mulf %41, %11 : vector<1x128xf32>
    %43 = arith.addf %40, %42 : vector<1x128xf32>
    %cst_12 = arith.constant 3.000000e-01 : f32
    %44 = vector.broadcast %cst_12 : f32 to vector<1x128xf32>
    %45 = arith.mulf %44, %12 : vector<1x128xf32>
    %46 = arith.addf %43, %45 : vector<1x128xf32>
    %cst_13 = arith.constant 4.000000e-01 : f32
    %47 = vector.broadcast %cst_13 : f32 to vector<1x128xf32>
    %48 = arith.mulf %47, %13 : vector<1x128xf32>
    %49 = arith.addf %46, %48 : vector<1x128xf32>
    %cst_14 = arith.constant 0.899999976 : f32
    %50 = vector.broadcast %cst_14 : f32 to vector<1x128xf32>
    %51 = arith.mulf %50, %38 : vector<1x128xf32>
    %52 = arith.subf %21, %36 : vector<1x128xf32>
    %53 = arith.mulf %51, %52 : vector<1x128xf32>
    %cst_15 = arith.constant 1.000000e+00 : f32
    %54 = vector.broadcast %cst_15 : f32 to vector<1x128xf32>
    %55 = arith.mulf %54, %21 : vector<1x128xf32>
    %56 = arith.subf %55, %49 : vector<1x128xf32>
    %cst_16 = arith.constant 2.500000e-02 : f32
    %57 = vector.broadcast %cst_16 : f32 to vector<1x128xf32>
    %58 = arith.mulf %57, %56 : vector<1x128xf32>
    %59 = arith.addf %53, %58 : vector<1x128xf32>
    %60 = tpu.iota {dimensions = array<i32: 1>} : vector<1x128xi32>
    %c128_i32 = arith.constant 128 : i32
    %61 = arith.muli %arg0, %c128_i32 : i32
    %62 = vector.broadcast %61 : i32 to vector<1x128xi32>
    %63 = arith.addi %62, %60 : vector<1x128xi32>
    %c8_i32 = arith.constant 8 : i32
    %64 = vector.broadcast %c8_i32 : i32 to vector<1x128xi32>
    %65 = arith.cmpi slt, %63, %64 : vector<1x128xi32>
    %c0_17 = arith.constant 0 : index
    %c0_18 = arith.constant 0 : index
    %66 = vector.load %arg4[%c0_17, %c0_18] : memref<1x128xf32, #tpu.memory_space<vmem>>, vector<1x128xf32>
    %cst_19 = arith.constant 0.000000e+00 : f32
    %67 = vector.broadcast %cst_19 : f32 to vector<1x128xf32>
    %68 = arith.select %65, %59, %67 : vector<1x128xi1>, vector<1x128xf32>
    %69 = arith.addf %66, %68 : vector<1x128xf32>
    %c0_20 = arith.constant 0 : index
    %c0_21 = arith.constant 0 : index
    %70 = vector.load %arg4[%c0_20, %c0_21] : memref<1x128xf32, #tpu.memory_space<vmem>>, vector<1x128xf32>
    tpu.vector_store %arg4[%c0_20, %c0_21], %69 {strides = array<i32>} : memref<1x128xf32, #tpu.memory_space<vmem>>, vector<1x128xf32>,
    %c0_i32_22 = arith.constant 0 : i32
    %71 = arith.cmpi eq, %arg0, %c0_i32_22 : i32
    %72 = arith.extui %71 : i1 to i32
    %c0_i32_23 = arith.constant 0 : i32
    %73 = arith.cmpi ne, %72, %c0_i32_23 : i32
    scf.if %73 {
      %c0_24 = arith.constant 0 : index
      %c0_25 = arith.constant 0 : index
      %74 = vector.load %arg4[%c0_24, %c0_25] : memref<1x128xf32, #tpu.memory_space<vmem>>, vector<1x128xf32>
      %75 = vector.shape_cast %74 : vector<1x128xf32> to vector<1x1x128xf32>
      %cst_26 = arith.constant dense<0.000000e+00> : vector<1xf32>
      %76 = vector.multi_reduction <add>, %75, %cst_26 [1, 2] : vector<1x1x128xf32> to vector<1xf32>
      %77 = vector.shape_cast %76 : vector<1xf32> to vector<1x1x1xf32>
      %78 = vector.extract %77[0, 0, 0] : f32 from vector<1x1x1xf32>
      %cst_27 = arith.constant 1.250000e-01 : f32
      %79 = arith.mulf %78, %cst_27 : f32
      %c0_28 = arith.constant 0 : index
      %c0_29 = arith.constant 0 : index
      %80 = memref.load %arg3[%c0_28, %c0_29] : memref<1x1xf32, #tpu.memory_space<smem>>
      memref.store %79, %arg3[%c0_28, %c0_29] : memref<1x1xf32, #tpu.memory_space<smem>>
    } else {
    }
    return
  }
  func.func @transform_0(%arg0: i32) -> (i32, i32) {
    %c0_i32 = arith.constant 0 : i32
    %c0_i32_0 = arith.constant 0 : i32
    return %c0_i32, %arg0 : i32, i32
  }
  func.func @transform_1(%arg0: i32) -> (i32, i32) {
    %c0_i32 = arith.constant 0 : i32
    %c0_i32_0 = arith.constant 0 : i32
    return %c0_i32, %arg0 : i32, i32
  }
  func.func @transform_2(%arg0: i32) -> (i32, i32) {
    %c0_i32 = arith.constant 0 : i32
    %c0_i32_0 = arith.constant 0 : i32
    %c0_i32_1 = arith.constant 0 : i32
    return %c0_i32, %c0_i32_0 : i32, i32
  }
}

</mosaic_0001>

<llo_original>
// kernel: tpu_custom_call.1
$region0: #{tpu_custom_call.1}
  #allocation0 [shape = 'u32[]', space=smem, size = 0x4, offset = 0x4, fixed_abs, tag = 'smem constant byte address 0x4 - core index']
  #allocation1 [shape = 'u32[144,128]{1,0:T(1,128)}', space=vmem, size = 0x12000, scoped, tag = 'internal scratch']
  #allocation2 [shape = 'f32[1,128]{1,0:T(1,128)}', space=vmem, size = 0x200, scoped, tag = 'scratch operand']
  %s0 = inlined_call_operand.hbm [shape: f32[4,128], index: 0, kind: input, shape index: {}]
  %s1 = inlined_call_operand.vmem [shape: s32[1,128], index: 1, kind: input, shape index: {}]
  %s2 = inlined_call_operand.hbm [shape: f32[1,1], index: 2, kind: output, shape index: {}]
  %s3 = sld [smem:[#allocation0]]
  $region30: #{tpu_custom_call.1} parent=0
    _
  %s5 = ssub.s32 1, %s3
  %s6 = scalar_select 0, %s5, %s3
  $region1: #{tpu_custom_call.1} parent=0
    #allocation3 [shape = 'u8[2048]{0}', space=vmem, size = 0x800, scoped, tag = 'input window, operand 0, single buffered']
    #allocation4 [shape = 's32[1]{0}', space=sflag, size = 0x4, scoped, tag = 'scoped memory for tpu_custom_call.1']
    #allocation5 [shape = 's32[1]{0}', space=sflag, size = 0x4, scoped, tag = 'scoped memory for tpu_custom_call.1']
    #allocation6 [shape = 'u8[512]{0}', space=smem, size = 0x200, scoped, tag = 'output window, operand 0, single buffered']
    %7 = vsyncpa [#allocation4], 0
    %8 = vsyncpa [#allocation5], 0
    // Predicated region
    $region2: #{tpu_custom_call.1} parent=1 // pred_check
      _
    $region3: #{tpu_custom_call.1} parent=1 // pred_check_branch
      %10 = sbr.rel (0) target = $region5
    $region4: #{tpu_custom_call.1} parent=1 // pred_region
      %s12 = ssub.s32 64, 64
      %13 = vsyncadd [#allocation4], %s12
      %s15 = sshll.u32 [#allocation3], 4
      %s16 = int_to_ptr.vmem [resolvable:$true] %s15
      %18 = dma.hbm_to_vmem [thread:$0]  %s0, 64, %s16, [#allocation4]
    $region5: #{tpu_custom_call.1} parent=1 // pred_fallthru
      _
    // Predicated region
    $region6: #{tpu_custom_call.1} parent=1 // pred_check
      _
    $region7: #{tpu_custom_call.1} parent=1 // pred_check_branch
      %20 = sbr.rel (0) target = $region9
    $region8: #{tpu_custom_call.1} parent=1 // pred_region
      _
    $region9: #{tpu_custom_call.1} parent=1 // pred_fallthru
      _
    // Predicated region
    $region10: #{tpu_custom_call.1} parent=1 // pred_check
      _
    $region11: #{tpu_custom_call.1} parent=1 // pred_check_branch
      %22 = sbr.rel (0) target = $region13
    $region12: #{tpu_custom_call.1} parent=1 // pred_region
      %23 = dma.done [#allocation4], 64
    $region13: #{tpu_custom_call.1} parent=1 // pred_fallthru
      _
    %p24 = scmp.eq.s32.totalorder 0, 0
    // Predicated region
    $region14: #{tpu_custom_call.1} parent=1 // pred_check
      %p25 = pneg %p24
    $region15: #{tpu_custom_call.1} parent=1 // pred_check_branch
      %27 = sbr.rel (%p25) target = $region17
    $region16: #{tpu_custom_call.1} parent=1 // pred_region
      %28 = vst [vmem:[#allocation2] sm:$0x1] 0.0
    $region17: #{tpu_custom_call.1} parent=1 // pred_fallthru
      _
    %v29 = vld [vmem:[#allocation3] sm:$0x1]
    %v30 = vld [vmem:[#allocation3 + $0x1] sm:$0x1]
    %v31 = vld [vmem:[#allocation3 + $0x2] sm:$0x1]
    %v32 = vld [vmem:[#allocation3 + $0x3] sm:$0x1]
    %v33 = vmax.f32 %v29, %v30
    %v34 = vmax.f32 %v33, %v31
    %v35 = vmax.f32 %v34, %v32
    %v36 = vsub.f32 %v29, %v35
    %v37 = vsub.f32 %v30, %v35
    %v38 = vsub.f32 %v31, %v35
    %v39 = vsub.f32 %v32, %v35
    %v40 = vmul.f32 %v36, 1.442695
    %v41 = vpow.pop %v40
    %v42 = vmul.f32 %v37, 1.442695
    %v43 = vpow.pop %v42
    %v44 = vadd.f32 %v41, %v43
    %v45 = vmul.f32 %v38, 1.442695
    %v46 = vpow.pop %v45
    %v47 = vadd.f32 %v44, %v46
    %v48 = vmul.f32 %v39, 1.442695
    %v49 = vpow.pop %v48
    %v50 = vadd.f32 %v47, %v49
    %v51 = vlog2.pop %v50
    %v52 = vmul.f32 %v51, 0.6931472
    %v53 = vld [vmem:[%s1] sm:$0x1]
    %vm54 = vcmp.eq.s32.totalorder %v53, 1
    %v55 = vsel %vm54, %v37, %v36
    %v56 = vsel %vm54, 0.2, 0.1
    %vm57 = vcmp.eq.s32.totalorder %v53, 2
    %v58 = vsel %vm57, %v38, %v55
    %v59 = vsel %vm57, 0.3, %v56
    %vm60 = vcmp.eq.s32.totalorder %v53, 3
    %v61 = vsel %vm60, %v39, %v58
    %v62 = vsel %vm60, 0.4, %v59
    %v63 = vmul.f32 %v36, 0.1
    %v64 = vmul.f32 %v37, 0.2
    %v65 = vadd.f32 %v63, %v64
    %v66 = vmul.f32 %v38, 0.3
    %v67 = vadd.f32 %v65, %v66
    %v68 = vmul.f32 %v39, 0.4
    %v69 = vadd.f32 %v67, %v68
    %v70 = vmul.f32 %v62, 0.9
    %v71 = vsub.f32 %v52, %v61
    %v72 = vmul.f32 %v70, %v71
    %v73 = vsub.f32 %v52, %v69
    %v74 = vmul.f32 %v73, 0.025
    %v75 = vadd.f32 %v72, %v74
    %v76 = vlaneseq
    %v77 = vand.u32 %v76, 127
    %s78 = smul.u32 0, 128
    %v79 = vstv %s78
    %v80 = vadd.s32 %v79, %v77
    %vm81 = vcmp.lt.s32.totalorder %v80, 8
    %v82 = vld [vmem:[#allocation2] sm:$0x1]
    %v83 = vsel %vm81, %v75, 0.0
    %v84 = vadd.f32 %v82, %v83
    %85 = vst [vmem:[#allocation2] sm:$0x1] %v84
    // Predicated region
    $region18: #{tpu_custom_call.1} parent=1 // pred_check
      %p86 = pneg %p24
    $region19: #{tpu_custom_call.1} parent=1 // pred_check_branch
      %88 = sbr.rel (%p86) target = $region21
    $region20: #{tpu_custom_call.1} parent=1 // pred_region
      %v89 = vld [vmem:[#allocation2] sm:$0x1]
      %vm90 = vcmask 1040384
      %v91 = vsel %vm90, %v89, 0.0
      %92 = vadd.xlane.f32.xlu0 %v91
      %v93 = vpop.xlane.xlu0 %92
      %v94 = vrot.slane %v93, 4
      %v95 = vadd.f32 %v93, %v94
      %v96 = vrot.slane %v95, 2
      %v97 = vadd.f32 %v95, %v96
      %v98 = vrot.slane %v97, 1
      %v99 = vadd.f32 %v97, %v98
      %s100 = vtos %v99
      %s101 = smul.f32 %s100, 0.125
      %s102 = scalar_lea.smem [#allocation6], 0
      %103 = sst [smem:[%s102]] %s101
    $region21: #{tpu_custom_call.1} parent=1 // pred_fallthru
      _
    // Predicated region
    $region22: #{tpu_custom_call.1} parent=1 // pred_check
      _
    $region23: #{tpu_custom_call.1} parent=1 // pred_check_branch
      %105 = sbr.rel (0) target = $region25
    $region24: #{tpu_custom_call.1} parent=1 // pred_region
      %s107 = ssub.s32 16, 16
      %108 = vsyncadd [#allocation5], %s107
      %111 = dma.smem_to_hbm [#allocation6], 16, %s2, [#allocation5]
    $region25: #{tpu_custom_call.1} parent=1 // pred_fallthru
      _
    // Predicated region
    $region26: #{tpu_custom_call.1} parent=1 // pred_check
      _
    $region27: #{tpu_custom_call.1} parent=1 // pred_check_branch
      %113 = sbr.rel (0) target = $region29
    $region28: #{tpu_custom_call.1} parent=1 // pred_region
      %114 = dma.done [#allocation5], 16
    $region29: #{tpu_custom_call.1} parent=1 // pred_fallthru
      _
    %115 = sfence
    %116 = vsyncpa [#allocation4], 1
    %117 = vsyncpa [#allocation5], 1

</llo_original>
